<compile_context>
chip_gen: v6e
topology: v6e:2x2x1
jax: 0.10.0
libtpu: 0.0.40
codegen_flags: <defaults>
</compile_context>

<pallas_src>
import jax
import jax.numpy as jnp
from jax.experimental import pallas as pl
from jax.experimental.pallas import tpu as pltpu


def make_pid_controller_forward(weight, bias, *, batch_tile=256 * 1024,
                                min_pallas_batch=1024):
    """Builds a forward fn equivalent to PidController.forward: x @ W.T + b.

    weight: (n_output, n_inputs) f32 (PyTorch nn.Linear layout), concrete.
    bias:   (n_output,)          f32, concrete.

    batch_tile: lanes per grid step for the Pallas path (must be a multiple
                of 128). Default 256K lanes keeps each step >= ~4 MiB of DMA
                while staying under every generation's default scoped VMEM.
    """
    n_output, n_inputs = weight.shape
    assert n_inputs >= 1 and n_output >= 1
    assert batch_tile % 128 == 0

    # Parameters are tiny and concrete: bake them into the kernel as
    # immediates (folds into vmul/vadd, no SMEM operand at all).
    w_const = [[float(weight[n, k]) for k in range(n_inputs)]
               for n in range(n_output)]
    b_const = [float(bias[n]) for n in range(n_output)]

    w_jax = jnp.asarray(weight, jnp.float32)
    b_jax = jnp.asarray(bias, jnp.float32)

    def _kernel(x_ref, o_ref):
        """y[n] = sum_k w[n,k] * x[k] + b[n], on dense (rows, 128) slabs.

        x_ref: VMEM (n_inputs, rows, 128)
        o_ref: VMEM (n_output, rows, 128)
        """
        for n in range(n_output):                 # tiny, unrolled at trace time
            acc = x_ref[0] * w_const[n][0]
            for k in range(1, n_inputs):
                acc = acc + x_ref[k] * w_const[n][k]
            acc = acc + b_const[n]
            o_ref[n] = acc.astype(o_ref.dtype)

    def _pallas_planar(x_t):
        """x_t: (n_inputs, batch) f32 with batch % 128 == 0."""
        batch = x_t.shape[1]
        n_rows = batch // 128
        # Free reshape (row-major contiguous): lanes stay dense, rows on sublanes.
        x3 = x_t.reshape(n_inputs, n_rows, 128)
        row_tile = min(batch_tile // 128, n_rows)
        grid = (pl.cdiv(n_rows, row_tile),)
        out3 = pl.pallas_call(
            _kernel,
            out_shape=jax.ShapeDtypeStruct((n_output, n_rows, 128), jnp.float32),
            grid=grid,
            in_specs=[pl.BlockSpec((n_inputs, row_tile, 128),
                                   lambda i: (0, i, 0))],
            out_specs=pl.BlockSpec((n_output, row_tile, 128),
                                   lambda i: (0, i, 0)),
            compiler_params=pltpu.CompilerParams(
                dimension_semantics=("parallel",)),
        )(x3)
        return out3                                # (n_output, n_rows, 128)

    def forward_planar(x_t):
        """SoA entry point: x_t is (n_inputs, batch). Returns (batch, n_output)."""
        batch = x_t.shape[1]
        if batch % 128 != 0 or batch < min_pallas_batch:
            return x_t.astype(jnp.float32).T @ w_jax.T + b_jax
        out3 = _pallas_planar(x_t.astype(jnp.float32))
        # (n_output, n_rows, 128) -> (batch, n_output); for n_output == 1 the
        # final transpose is a pure metadata reshape.
        return out3.reshape(n_output, batch).T

    def forward(x):
        """Module-layout entry point: x is (batch, n_inputs), like nn.Linear."""
        batch = x.shape[0]
        if batch % 128 != 0 or batch < min_pallas_batch:
            # pallas_call launch + DMA setup dwarfs ~7*batch flops here; let
            # XLA fuse the whole thing.
            return x.astype(jnp.float32) @ w_jax.T + b_jax
        # One unavoidable AoS->SoA relayout given the module's (batch, n_inputs)
        # contract; SoA callers should use forward.planar to skip it.
        return forward_planar(x.astype(jnp.float32).T)

    forward.planar = forward_planar
    return forward


if __name__ == "__main__":
    # PidController(n_inputs=3, n_output=1): classic PID has 3 inputs
    # (error, d_error, integral_error) and 1 output (control signal).
    n_inputs, n_output = 3, 1

    key = jax.random.PRNGKey(0)
    k_w, k_b, k_x1, k_x2, k_x3 = jax.random.split(key, 5)

    # Deterministic init mimicking torch.nn.Linear default:
    # U(-1/sqrt(fan_in), 1/sqrt(fan_in)) for both weight and bias.
    bound = 1.0 / jnp.sqrt(jnp.float32(n_inputs))
    weight = jax.random.uniform(
        k_w, (n_output, n_inputs), jnp.float32, minval=-bound, maxval=bound)
    bias = jax.random.uniform(
        k_b, (n_output,), jnp.float32, minval=-bound, maxval=bound)

    # Small row-tile (batch_tile=1024 -> 8 sublane-rows/step) so the demo
    # exercises a multi-step grid and a masked boundary block while keeping the
    # arrays tiny; production default is batch_tile=256K lanes.
    forward = jax.jit(make_pid_controller_forward(weight, bias, batch_tile=1024))

    def ref(x):
        return x @ weight.T + bias

    cases = [
        ("pallas_multi_step", 4096, k_x1),   # grid of 4 full blocks
        ("pallas_boundary", 1920, k_x2),     # grid of 2, last block masked
        ("xla_fallback", 8, k_x3),           # tiny batch -> plain XLA path
    ]
    for name, batch, kx in cases:
        x = jax.random.normal(kx, (batch, n_inputs), jnp.float32)
        y = jax.block_until_ready(forward(x))
        y_ref = ref(x)
        assert y.shape == (batch, n_output), (name, y.shape)
        assert jnp.allclose(y, y_ref, atol=1e-5, rtol=1e-5), f"mismatch: {name}"

    print("KERNEL_OK")
</pallas_src>

<mosaic_0001>
module attributes {stable_mosaic.version = 11 : i64} {
  func.func @_kernel(%arg0: i32, %arg1: memref<3x8x128xf32, #tpu.memory_space<vmem>>, %arg2: memref<1x8x128xf32, #tpu.memory_space<vmem>>) attributes {dimension_semantics = [#tpu.dimension_semantics<parallel>], iteration_bounds = array<i64: 4>, scalar_prefetch = 0 : i64, scratch_operands = 0 : i64, tpu.core_type = #tpu.core_type<tc>, window_params = [{transform_indices = @transform_0, window_bounds = array<i64: 3, 8, 128>}, {transform_indices = @transform_1, window_bounds = array<i64: 1, 8, 128>}]} {
    %c0 = arith.constant 0 : index
    %c0_0 = arith.constant 0 : index
    %c0_1 = arith.constant 0 : index
    %0 = vector.load %arg1[%c0, %c0_0, %c0_1] : memref<3x8x128xf32, #tpu.memory_space<vmem>>, vector<1x8x128xf32>
    %1 = vector.shape_cast %0 : vector<1x8x128xf32> to vector<8x128xf32>
    %cst = arith.constant 0.395270288 : f32
    %2 = vector.broadcast %cst : f32 to vector<8x128xf32>
    %3 = arith.mulf %1, %2 : vector<8x128xf32>
    %c1 = arith.constant 1 : index
    %c0_2 = arith.constant 0 : index
    %c0_3 = arith.constant 0 : index
    %4 = vector.load %arg1[%c1, %c0_2, %c0_3] : memref<3x8x128xf32, #tpu.memory_space<vmem>>, vector<1x8x128xf32>
    %5 = vector.shape_cast %4 : vector<1x8x128xf32> to vector<8x128xf32>
    %cst_4 = arith.constant -0.366757542 : f32
    %6 = vector.broadcast %cst_4 : f32 to vector<8x128xf32>
    %7 = arith.mulf %5, %6 : vector<8x128xf32>
    %8 = arith.addf %3, %7 : vector<8x128xf32>
    %c2 = arith.constant 2 : index
    %c0_5 = arith.constant 0 : index
    %c0_6 = arith.constant 0 : index
    %9 = vector.load %arg1[%c2, %c0_5, %c0_6] : memref<3x8x128xf32, #tpu.memory_space<vmem>>, vector<1x8x128xf32>
    %10 = vector.shape_cast %9 : vector<1x8x128xf32> to vector<8x128xf32>
    %cst_7 = arith.constant -0.315027595 : f32
    %11 = vector.broadcast %cst_7 : f32 to vector<8x128xf32>
    %12 = arith.mulf %10, %11 : vector<8x128xf32>
    %13 = arith.addf %8, %12 : vector<8x128xf32>
    %cst_8 = arith.constant -0.568928063 : f32
    %14 = vector.broadcast %cst_8 : f32 to vector<8x128xf32>
    %15 = arith.addf %13, %14 : vector<8x128xf32>
    %c0_9 = arith.constant 0 : index
    %c0_10 = arith.constant 0 : index
    %c0_11 = arith.constant 0 : index
    %16 = vector.load %arg2[%c0_9, %c0_10, %c0_11] : memref<1x8x128xf32, #tpu.memory_space<vmem>>, vector<1x8x128xf32>
    %17 = vector.shape_cast %16 : vector<1x8x128xf32> to vector<8x128xf32>
    %18 = vector.shape_cast %15 : vector<8x128xf32> to vector<1x8x128xf32>
    tpu.vector_store %arg2[%c0_9, %c0_10, %c0_11], %18 {strides = array<i32>} : memref<1x8x128xf32, #tpu.memory_space<vmem>>, vector<1x8x128xf32>,
    return
  }
  func.func @transform_0(%arg0: i32) -> (i32, i32, i32) {
    %c0_i32 = arith.constant 0 : i32
    %c0_i32_0 = arith.constant 0 : i32
    %c0_i32_1 = arith.constant 0 : i32
    return %c0_i32, %arg0, %c0_i32_0 : i32, i32, i32
  }
  func.func @transform_1(%arg0: i32) -> (i32, i32, i32) {
    %c0_i32 = arith.constant 0 : i32
    %c0_i32_0 = arith.constant 0 : i32
    %c0_i32_1 = arith.constant 0 : i32
    return %c0_i32, %arg0, %c0_i32_0 : i32, i32, i32
  }
}

</mosaic_0001>

<llo_original>
// kernel: forward.1
$region0: #{forward.1}
  #allocation0 [shape = 'u32[]', space=smem, size = 0x4, offset = 0x4, fixed_abs, tag = 'smem constant byte address 0x4 - core index']
  #allocation1 [shape = 'u32[144,128]{1,0:T(1,128)}', space=vmem, size = 0x12000, scoped, tag = 'internal scratch']
  %s0 = inlined_call_operand.vmem [shape: f32[3,32,128], index: 0, kind: input, shape index: {}]
  %s1 = inlined_call_operand.hbm [shape: f32[1,32,128], index: 1, kind: output, shape index: {}]
  %s2 = sld [smem:[#allocation0]]
  $region75: #{forward.1} parent=0
    _
  %s4 = ssub.s32 1, %s2
  %s5 = scalar_select 0, %s4, %s2
  $region1: #{forward.1} parent=0
    #allocation2 [shape = 'u8[24576]{0}', space=vmem, size = 0x6000, scoped, tag = 'input window, operand 0']
    #allocation3 [shape = 'u8[8192]{0}', space=vmem, size = 0x2000, scoped, tag = 'output window, operand 0']
    #allocation4 [shape = 's32[2]{0}', space=sflag, size = 0x8, scoped, tag = 'scoped memory for forward.1']
    %6 = vsyncpa [#allocation4], 0
    %s7 = scalar_lea.sflag [#allocation4], 1
    %8 = vsyncpa %s7, 0
    loop: start=0, step=1, limit=6
    $region2: #{forward.1} parent=1 // loop_pre_header
      _
    $region3: #{forward.1} parent=1 // loop_header
      %s10 = sphi 0, %s14
      %p11 = scmp.ge.s32.totalorder %s10, 6
      %s20 = sphi 0, %s22
      %s23 = sphi 0, %s20
      %s24 = sphi 0, %s23
      %s40 = sphi 0, %s24
      %s46 = sphi 0, %s48
      %s49 = sphi 0, %s46
      %s50 = sphi 0, %s49
      %s66 = sphi 0, %s50
    $region4: #{forward.1} parent=1 // loop_header_branch
      %13 = sbr.rel (%p11) target = $region8
    $region5: #{forward.1} parent=1 // loop_body
      %s15 = ssub.s32 %s10, 1
      %s16 = ssub.s32 %s10, 2
      %s17 = sadd.s32 %s10, 1
      %s18 = ssub.s32 %s10, %s17
      %p19 = scmp.eq.s32.totalorder %s18, 0
      %s21 = sadd.s32 %s20, 1
      %s22 = scalar_select %p19, %s20, %s21
      %p25 = pneg %p19
      %p26 = scmp.eq.s32.totalorder %s10, 3
      %p27 = por %p25, %p26
      %p28 = scmp.ne.s32.totalorder %s20, %s23
      %p29 = scmp.eq.s32.totalorder %s10, 0
      %p30 = por %p28, %p29
      %p31 = scmp.ne.s32.totalorder %s20, %s23
      %p32 = scmp.eq.s32.totalorder %s15, 3
      %p33 = por %p31, %p32
      %p34 = scmp.ne.s32.totalorder %s23, %s24
      %p35 = scmp.eq.s32.totalorder %s15, 0
      %p36 = por %p34, %p35
      %p37 = scmp.ne.s32.totalorder %s23, %s24
      %p38 = scmp.eq.s32.totalorder %s16, 3
      %p39 = por %p37, %p38
      %p41 = scmp.ne.s32.totalorder %s24, %s40
      %p42 = scmp.eq.s32.totalorder %s16, 0
      %p43 = por %p41, %p42
      %s44 = ssub.s32 %s10, %s17
      %p45 = scmp.eq.s32.totalorder %s44, 0
      %s47 = sadd.s32 %s46, 1
      %s48 = scalar_select %p45, %s46, %s47
      %p51 = pneg %p45
      %p52 = scmp.eq.s32.totalorder %s10, 3
      %p53 = por %p51, %p52
      %p54 = scmp.ne.s32.totalorder %s46, %s49
      %p55 = scmp.eq.s32.totalorder %s10, 0
      %p56 = por %p54, %p55
      %p57 = scmp.ne.s32.totalorder %s46, %s49
      %p58 = scmp.eq.s32.totalorder %s15, 3
      %p59 = por %p57, %p58
      %p60 = scmp.ne.s32.totalorder %s49, %s50
      %p61 = scmp.eq.s32.totalorder %s15, 0
      %p62 = por %p60, %p61
      %p63 = scmp.ne.s32.totalorder %s49, %s50
      %p64 = scmp.eq.s32.totalorder %s16, 3
      %p65 = por %p63, %p64
      %p67 = scmp.ne.s32.totalorder %s50, %s66
      %p68 = scmp.eq.s32.totalorder %s16, 0
      %p69 = por %p67, %p68
      %p70 = scmp.le.s32.totalorder 1, %s10
      %p71 = scmp.lt.s32.totalorder %s10, 5
      %p72 = pnand %p70, %p71
      %p73 = pneg %p72
      // Predicated region
      $region9: #{forward.1} parent=5 // pred_check
        _
      $region10: #{forward.1} parent=5 // pred_check_branch
        %75 = sbr.rel (%p72) target = $region12
      $region11: #{forward.1} parent=5 // pred_region
        %s76 = ssub.s32 %s10, 1
      $region12: #{forward.1} parent=5 // pred_fallthru
        _
      %p77 = scmp.lt.s32.totalorder %s10, 4
      // Predicated region
      $region13: #{forward.1} parent=5 // pred_check
        %p78 = pneg %p77
      $region14: #{forward.1} parent=5 // pred_check_branch
        %80 = sbr.rel (%p78) target = $region16
      $region15: #{forward.1} parent=5 // pred_region
        // Predicated region
        $region17: #{forward.1} parent=15 // pred_check
          %p81 = pneg %p30
        $region18: #{forward.1} parent=15 // pred_check_branch
          %83 = sbr.rel (%p81) target = $region20
        $region19: #{forward.1} parent=15 // pred_region
          %s84 = sand.u32 %s20, 1
          %s85 = sand.u32 %s20, 1
          %s86 = smul.addr %s85, 24
          %s87 = scalar_lea.vmem [#allocation2], %s86
          %s88 = smul.addr %s10, 8
          %s89 = scalar_lea.vmem %s0, %s88
          // Predicated region
          $region21: #{forward.1} parent=19 // pred_check
            _
          $region22: #{forward.1} parent=19 // pred_check_branch
            %91 = sbr.rel (0) target = $region24
          $region23: #{forward.1} parent=19 // pred_region
            // Predicated region
            $region25: #{forward.1} parent=23 // pred_check
              _
            $region26: #{forward.1} parent=23 // pred_check_branch
              %93 = sbr.rel (0) target = $region28
            $region27: #{forward.1} parent=23 // pred_region
              // Predicated region
              $region40: #{forward.1} parent=27 // pred_check
                _
              $region41: #{forward.1} parent=27 // pred_check_branch
                %113 = sbr.rel (0) target = $region43
              $region42: #{forward.1} parent=27 // pred_region
                loop: start=0, step=1, limit=1
                $region44: #{forward.1} parent=42 // loop_pre_header
                  _
                $region45: #{forward.1} parent=42 // loop_header
                  %s115 = sphi 0, %s119
                  %p116 = scmp.ge.s32.totalorder %s115, 1
                  %s120 = sphi %s89, %s89
                  %s121 = sphi %s87, %s87
                $region46: #{forward.1} parent=42 // loop_header_branch
                  %118 = sbr.rel (%p116) target = $region50
                $region47: #{forward.1} parent=42 // loop_body
                  %v122 = vld [vmem:[%s120] sm:$0xff]
                  %123 = vst [vmem:[%s121] sm:$0xff] %v122
                  %v124 = vld [vmem:[%s120 + $0x20] sm:$0xff]
                  %125 = vst [vmem:[%s121 + $0x8] sm:$0xff] %v124
                  %v126 = vld [vmem:[%s120 + $0x40] sm:$0xff]
                  %127 = vst [vmem:[%s121 + $0x10] sm:$0xff] %v126
                $region48: #{forward.1} parent=42 // loop_footer
                  %s119 = sadd.s32 1, %s115
                $region49: #{forward.1} parent=42 // loop_footer_branch
                  %114 = sbr.rel target = $region45
                $region50: #{forward.1} parent=42 // loop_exit
                  _
              $region43: #{forward.1} parent=27 // pred_fallthru
                _
              // Predicated region
              $region51: #{forward.1} parent=27 // pred_check
                _
              $region52: #{forward.1} parent=27 // pred_check_branch
                %129 = sbr.rel target = $region54
              $region53: #{forward.1} parent=27 // pred_region
                _
              $region54: #{forward.1} parent=27 // pred_fallthru
                _
            $region28: #{forward.1} parent=23 // pred_fallthru
              _
            // Predicated region
            $region29: #{forward.1} parent=23 // pred_check
              _
            $region30: #{forward.1} parent=23 // pred_check_branch
              %95 = sbr.rel target = $region32
            $region31: #{forward.1} parent=23 // pred_region
              %s97 = ssub.s32 256, 1
              loop: start=0, step=1, limit=1
              $region33: #{forward.1} parent=31 // loop_pre_header
                _
              $region34: #{forward.1} parent=31 // loop_header
                %s99 = sphi 0, %s103
                %p100 = scmp.ge.s32.totalorder %s99, 1
                %s104 = sphi %s89, %s89
                %s105 = sphi %s87, %s87
              $region35: #{forward.1} parent=31 // loop_header_branch
                %102 = sbr.rel (%p100) target = $region39
              $region36: #{forward.1} parent=31 // loop_body
                %v106 = vld [vmem:[%s104] sm:%s97]
                %107 = vst [vmem:[%s105] sm:%s97] %v106
                %v108 = vld [vmem:[%s104 + $0x20] sm:%s97]
                %109 = vst [vmem:[%s105 + $0x8] sm:%s97] %v108
                %v110 = vld [vmem:[%s104 + $0x40] sm:%s97]
                %111 = vst [vmem:[%s105 + $0x10] sm:%s97] %v110
              $region37: #{forward.1} parent=31 // loop_footer
                %s103 = sadd.s32 1, %s99
              $region38: #{forward.1} parent=31 // loop_footer_branch
                %98 = sbr.rel target = $region34
              $region39: #{forward.1} parent=31 // loop_exit
                _
            $region32: #{forward.1} parent=23 // pred_fallthru
              _
          $region24: #{forward.1} parent=19 // pred_fallthru
            _
          %130 = vnop
        $region20: #{forward.1} parent=15 // pred_fallthru
          _
      $region16: #{forward.1} parent=5 // pred_fallthru
        _
      %p131 = scmp.le.s32.totalorder 1, %s10
      %p132 = scmp.lt.s32.totalorder %s10, 5
      %p133 = pnand %p131, %p132
      %p134 = pneg %p133
      // Predicated region
      $region55: #{forward.1} parent=5 // pred_check
        _
      $region56: #{forward.1} parent=5 // pred_check_branch
        %136 = sbr.rel (%p133) target = $region58
      $region57: #{forward.1} parent=5 // pred_region
        %s137 = ssub.s32 %s10, 1
        %s138 = sand.u32 %s23, 1
        %s139 = sand.u32 %s23, 1
        %s140 = smul.addr %s139, 24
        %s141 = scalar_lea.vmem [#allocation2], %s140
        // Predicated region
        $region59: #{forward.1} parent=57 // pred_check
          %p142 = pneg %p36
        $region60: #{forward.1} parent=57 // pred_check_branch
          %144 = sbr.rel (%p142) target = $region62
        $region61: #{forward.1} parent=57 // pred_region
          _
        $region62: #{forward.1} parent=57 // pred_fallthru
          _
        %s145 = sand.u32 %s23, 1
        %s146 = sand.u32 %s23, 1
        %s147 = smul.addr %s146, 24
        %s148 = scalar_lea.vmem [#allocation2], %s147
        %p149 = pneg %p36
        %p150 = pneg %p33
        %p151 = pneg %p62
        %p152 = pneg %p59
        %s153 = sand.u32 %s49, 1
        %s154 = scalar_lea.sflag [#allocation4], %s153
        %s155 = sand.u32 %s49, 1
        %s156 = smul.addr %s155, 8
        %s157 = scalar_lea.vmem [#allocation3], %s156
        %v158 = vld [vmem:[%s141] sm:$0xff]
        %v159 = vmul.f32 %v158, 0.3952703
        %s160 = scalar_lea.vmem %s141, 8 [#allocation2]
        %v161 = vld [vmem:[%s160] sm:$0xff]
        %v162 = vmul.f32 %v161, -0.36675754
        %v163 = vadd.f32 %v159, %v162
        %s164 = scalar_lea.vmem %s141, 16 [#allocation2]
        %v165 = vld [vmem:[%s164] sm:$0xff]
        %v166 = vmul.f32 %v165, -0.3150276
        %v167 = vadd.f32 %v163, %v166
        %v168 = vadd.f32 %v167, -0.56892806
        %169 = vst [vmem:[%s157] sm:$0xff] %v168
        %s170 = sand.u32 %s49, 1
        %s171 = scalar_lea.sflag [#allocation4], %s170
        %s172 = sand.u32 %s49, 1
        %s173 = smul.addr %s172, 8
        %s174 = scalar_lea.vmem [#allocation3], %s173
        // Predicated region
        $region63: #{forward.1} parent=57 // pred_check
          %p175 = pneg %p59
        $region64: #{forward.1} parent=57 // pred_check_branch
          %177 = sbr.rel (%p175) target = $region66
        $region65: #{forward.1} parent=57 // pred_region
          %s179 = ssub.s32 128, 128
          %180 = vsyncadd %s171, %s179
          %s181 = smul.addr %s15, 128
          %s182 = scalar_lea.hbm %s1, %s181
          %s184 = sshll.u32 %s174, 4
          %s185 = int_to_ptr.vmem [resolvable:$true] %s184
          %187 = dma.vmem_to_hbm [thread:$0]  %s185, 128, %s182, %s171
        $region66: #{forward.1} parent=57 // pred_fallthru
          _
      $region58: #{forward.1} parent=5 // pred_fallthru
        _
      %p188 = scmp.le.s32.totalorder 2, %s10
      // Predicated region
      $region67: #{forward.1} parent=5 // pred_check
        %p189 = pneg %p188
      $region68: #{forward.1} parent=5 // pred_check_branch
        %191 = sbr.rel (%p189) target = $region70
      $region69: #{forward.1} parent=5 // pred_region
        %s192 = ssub.s32 %s10, 2
        // Predicated region
        $region71: #{forward.1} parent=69 // pred_check
          %p193 = pneg %p65
        $region72: #{forward.1} parent=69 // pred_check_branch
          %195 = sbr.rel (%p193) target = $region74
        $region73: #{forward.1} parent=69 // pred_region
          %s196 = sand.u32 %s50, 1
          %s197 = scalar_lea.sflag [#allocation4], %s196
          %s198 = sand.u32 %s50, 1
          %s199 = smul.addr %s198, 8
          %s200 = scalar_lea.vmem [#allocation3], %s199
          %201 = dma.done %s197, 128
        $region74: #{forward.1} parent=69 // pred_fallthru
          _
      $region70: #{forward.1} parent=5 // pred_fallthru
        _
    $region6: #{forward.1} parent=1 // loop_footer
      %s14 = sadd.s32 1, %s10
    $region7: #{forward.1} parent=1 // loop_footer_branch
      %9 = sbr.rel target = $region3
    $region8: #{forward.1} parent=1 // loop_exit
      _
    %202 = vsyncpa [#allocation4], 1
    %s203 = scalar_lea.sflag [#allocation4], 1
    %204 = vsyncpa %s203, 1

</llo_original>
